<compile_context>
chip_gen: v6e
topology: v6e:2x2x1
jax: 0.10.0
libtpu: 0.0.40
codegen_flags: <defaults>
</compile_context>

<pallas_src>
import functools

import jax
import jax.numpy as jnp
from jax.experimental import pallas as pl
from jax.experimental.pallas import tpu as pltpu

_LANE = 128
_SUBLANE = 8
_NEG_BIG = -1e30  # padded-lane bias -> exp() == 0 exactly


def _round_up(n, m):
    return ((n + m - 1) // m) * m


def _policy_kernel(num_hidden, eps,
                   x_ref, w1_ref, b1_ref, wh_ref, bh_ref, wo_ref, bo_ref,
                   o_ref):
    x = x_ref[...]                                             # (TB, F) f32

    # valid_actions = (x.round().int() == 0).float()
    valid = (jnp.round(x) == 0.0).astype(jnp.float32)          # (TB, F)

    # linear1 + ReLU  (bf16 MXU operands, f32 accumulation)
    h = jnp.dot(x.astype(jnp.bfloat16), w1_ref[...],
                preferred_element_type=jnp.float32) + b1_ref[...]
    h = jnp.maximum(h, 0.0)                                    # (TB, W)

    # hidden layers + ReLU (static unroll; ref[l] is a zero-cost leading-axis view)
    for l in range(num_hidden):
        h = jnp.dot(h.astype(jnp.bfloat16), wh_ref[l],
                    preferred_element_type=jnp.float32) + bh_ref[l]
        h = jnp.maximum(h, 0.0)

    # output layer
    logits = jnp.dot(h.astype(jnp.bfloat16), wo_ref[...],
                     preferred_element_type=jnp.float32) + bo_ref[...]

    # fused softmax * valid / max(sum, eps):
    #   softmax(l)*v / max(sum(softmax(l)*v), eps)
    # = e*v / max(sum(e*v), eps*sum(e)),   e = exp(l - max(l))
    m = jnp.max(logits, axis=1, keepdims=True)
    e = jnp.exp(logits - m)
    pe = e * valid
    denom = jnp.maximum(jnp.sum(pe, axis=1, keepdims=True),
                        eps * jnp.sum(e, axis=1, keepdims=True))
    o_ref[...] = pe / denom


def feed_forward_policy(x, params, *, num_hidden, eps=1e-6, batch_tile=256):
    """FeedForwardPolicy forward pass in one Pallas kernel.

    x: (batch, input_length) float32
    params (float32):
        w1: (input_length, width)        b1: (1, width)
        wh: (num_hidden, width, width)   bh: (num_hidden, width)
        wo: (width, output_length)       bo: (1, output_length)
    """
    w1, b1 = params["w1"], params["b1"]
    wh, bh = params["wh"], params["bh"]
    wo, bo = params["wo"], params["bo"]

    batch, in_len = x.shape
    width = w1.shape[1]
    out_len = wo.shape[1]
    assert out_len == in_len, "valid-action mask requires output_length == input_length"
    assert num_hidden >= 1 and wh.shape[0] == num_hidden

    # ---- lane-dense padding of feature dims, sublane-aligned batch tiling ----
    in_p = _round_up(in_len, _LANE)
    w_p = _round_up(width, _LANE)
    out_p = _round_up(out_len, _LANE)

    tb = min(batch_tile, _round_up(batch, _SUBLANE))
    tb = _round_up(tb, _SUBLANE)
    b_p = _round_up(batch, tb)
    n_tiles = b_p // tb

    x_p = jnp.zeros((b_p, in_p), jnp.float32).at[:batch, :in_len].set(
        x.astype(jnp.float32))

    # weights in bf16 (MXU operands); biases stay f32 (added on the f32 accum path)
    w1_p = jnp.zeros((in_p, w_p), jnp.float32).at[:in_len, :width].set(
        w1).astype(jnp.bfloat16)
    b1_p = jnp.zeros((1, w_p), jnp.float32).at[:, :width].set(
        b1.reshape(1, width))

    wh_p = jnp.zeros((num_hidden, w_p, w_p), jnp.float32).at[
        :, :width, :width].set(wh).astype(jnp.bfloat16)
    bh_p = jnp.zeros((num_hidden, 1, w_p), jnp.float32).at[
        :, 0, :width].set(bh.reshape(num_hidden, width))

    wo_p = jnp.zeros((w_p, out_p), jnp.float32).at[:width, :out_len].set(
        wo).astype(jnp.bfloat16)
    # padded output lanes get a huge negative bias -> exp() == 0 -> they drop
    # out of both softmax sums and the masked renormalization exactly.
    bo_p = jnp.full((1, out_p), _NEG_BIG, jnp.float32).at[:, :out_len].set(
        bo.reshape(1, out_len))

    # ---- cost estimate (advisory, for XLA scheduling around the call) ----
    flops = 2 * b_p * (in_p * w_p + num_hidden * w_p * w_p + w_p * out_p)
    bytes_accessed = (x_p.size * 4 + w1_p.size * 2 + b1_p.size * 4
                      + wh_p.size * 2 + bh_p.size * 4
                      + wo_p.size * 2 + bo_p.size * 4
                      + b_p * out_p * 4)
    cost = pl.CostEstimate(flops=flops,
                           transcendentals=b_p * out_p,
                           bytes_accessed=bytes_accessed)

    grid_spec = pltpu.PrefetchScalarGridSpec(
        num_scalar_prefetch=0,
        grid=(n_tiles,),
        in_specs=[
            # x streams over the batch grid axis
            pl.BlockSpec((tb, in_p), lambda i: (i, 0)),
            # weights/biases: constant index_map -> DMA'd once, VMEM-resident
            pl.BlockSpec((in_p, w_p), lambda i: (0, 0)),
            pl.BlockSpec((1, w_p), lambda i: (0, 0)),
            pl.BlockSpec((num_hidden, w_p, w_p), lambda i: (0, 0, 0)),
            pl.BlockSpec((num_hidden, 1, w_p), lambda i: (0, 0, 0)),
            pl.BlockSpec((w_p, out_p), lambda i: (0, 0)),
            pl.BlockSpec((1, out_p), lambda i: (0, 0)),
        ],
        out_specs=pl.BlockSpec((tb, out_p), lambda i: (i, 0)),
    )

    kernel = functools.partial(_policy_kernel, num_hidden, eps)
    out_padded = pl.pallas_call(
        kernel,
        out_shape=jax.ShapeDtypeStruct((b_p, out_p), jnp.float32),
        grid_spec=grid_spec,
        compiler_params=pltpu.CompilerParams(
            dimension_semantics=("parallel",),
            vmem_limit_bytes=48 << 20),
        cost_estimate=cost,
    )(x_p, w1_p, b1_p, wh_p, bh_p, wo_p, bo_p)

    return out_padded[:batch, :out_len]


def init_params(key, input_length, width, output_length, num_hidden):
    """Deterministic init mirroring nn.Linear default (uniform +/- 1/sqrt(fan_in))."""
    keys = jax.random.split(key, 2 * (num_hidden + 2))
    ki = iter(keys)

    def linear(kw, kb, fan_in, fan_out):
        bound = 1.0 / jnp.sqrt(jnp.float32(fan_in))
        w = jax.random.uniform(kw, (fan_in, fan_out), jnp.float32, -bound, bound)
        b = jax.random.uniform(kb, (1, fan_out), jnp.float32, -bound, bound)
        return w, b

    w1, b1 = linear(next(ki), next(ki), input_length, width)
    whs, bhs = [], []
    for _ in range(num_hidden):
        w, b = linear(next(ki), next(ki), width, width)
        whs.append(w)
        bhs.append(b[0])
    wo, bo = linear(next(ki), next(ki), width, output_length)

    return {
        "w1": w1, "b1": b1,
        "wh": jnp.stack(whs, axis=0),          # (H, W, W)
        "bh": jnp.stack(bhs, axis=0),          # (H, W)
        "wo": wo, "bo": bo,
    }


def reference_forward_f32(x, params, num_hidden, eps=1e-6):
    """Pure-JAX reference matching the PyTorch module exactly (f32 matmuls)."""
    valid = (jnp.round(x) == 0.0).astype(jnp.float32)
    h = jnp.maximum(x @ params["w1"] + params["b1"], 0.0)
    for l in range(num_hidden):
        h = jnp.maximum(h @ params["wh"][l] + params["bh"][l][None, :], 0.0)
    logits = h @ params["wo"] + params["bo"]
    p = jax.nn.softmax(logits, axis=1) * valid
    return p / jnp.maximum(p.sum(axis=1, keepdims=True), eps)


def reference_forward_bf16(x, params, num_hidden, eps=1e-6):
    """Reference mirroring the kernel's numerics (bf16 MXU ops, f32 accum, fused epilogue)."""
    def mm(a, w):
        return jnp.dot(a.astype(jnp.bfloat16), w.astype(jnp.bfloat16),
                       preferred_element_type=jnp.float32)
    valid = (jnp.round(x) == 0.0).astype(jnp.float32)
    h = jnp.maximum(mm(x, params["w1"]) + params["b1"], 0.0)
    for l in range(num_hidden):
        h = jnp.maximum(mm(h, params["wh"][l]) + params["bh"][l][None, :], 0.0)
    logits = mm(h, params["wo"]) + params["bo"]
    m = jnp.max(logits, axis=1, keepdims=True)
    e = jnp.exp(logits - m)
    pe = e * valid
    denom = jnp.maximum(pe.sum(axis=1, keepdims=True),
                        eps * e.sum(axis=1, keepdims=True))
    return pe / denom


if __name__ == "__main__":
    # Small shapes: a hex-like board with 16 cells -> input_length == output_length == 16.
    batch, input_length, width, output_length, num_hidden = 8, 16, 32, 16, 1

    key = jax.random.PRNGKey(0)
    k_params, k_x = jax.random.split(key)

    params = init_params(k_params, input_length, width, output_length, num_hidden)
    # Board state: mostly 0 (empty / valid), some +/-1 (occupied / invalid).
    x = jax.random.randint(k_x, (batch, input_length), -1, 2).astype(jnp.float32)

    out = feed_forward_policy(x, params, num_hidden=num_hidden)
    out = jax.block_until_ready(out)

    assert out.shape == (batch, output_length)

    # Tight check against a reference that mirrors the kernel's numerics.
    ref_bf16 = reference_forward_bf16(x, params, num_hidden)
    assert jnp.allclose(out, ref_bf16, atol=1e-4, rtol=1e-4), \
        "mismatch vs bf16-matched JAX reference"

    # Sanity check against the exact f32 module semantics (bf16 MXU tolerance).
    ref_f32 = reference_forward_f32(x, params, num_hidden)
    assert jnp.allclose(out, ref_f32, atol=2e-2, rtol=2e-2), \
        "mismatch vs f32 JAX reference"

    print("KERNEL_OK")
</pallas_src>

<mosaic_0001>
module attributes {stable_mosaic.version = 11 : i64} {
  func.func @_policy_kernel(%arg0: i32, %arg1: memref<8x128xf32, #tpu.memory_space<vmem>>, %arg2: memref<128x128xbf16, #tpu.memory_space<vmem>>, %arg3: memref<1x128xf32, #tpu.memory_space<vmem>>, %arg4: memref<1x128x128xbf16, #tpu.memory_space<vmem>>, %arg5: memref<1x1x128xf32, #tpu.memory_space<vmem>>, %arg6: memref<128x128xbf16, #tpu.memory_space<vmem>>, %arg7: memref<1x128xf32, #tpu.memory_space<vmem>>, %arg8: memref<8x128xf32, #tpu.memory_space<vmem>>) attributes {dimension_semantics = [#tpu.dimension_semantics<parallel>], iteration_bounds = array<i64: 1>, scalar_prefetch = 0 : i64, scratch_operands = 0 : i64, tpu.core_type = #tpu.core_type<tc>, window_params = [{transform_indices = @transform_0, window_bounds = array<i64: 8, 128>}, {pipeline_mode = #tpu.pipeline_mode<synchronous>, transform_indices = @transform_1, window_bounds = array<i64: 128, 128>}, {pipeline_mode = #tpu.pipeline_mode<synchronous>, transform_indices = @transform_2, window_bounds = array<i64: 1, 128>}, {pipeline_mode = #tpu.pipeline_mode<synchronous>, transform_indices = @transform_3, window_bounds = array<i64: 1, 128, 128>}, {pipeline_mode = #tpu.pipeline_mode<synchronous>, transform_indices = @transform_4, window_bounds = array<i64: 1, 1, 128>}, {pipeline_mode = #tpu.pipeline_mode<synchronous>, transform_indices = @transform_5, window_bounds = array<i64: 128, 128>}, {pipeline_mode = #tpu.pipeline_mode<synchronous>, transform_indices = @transform_6, window_bounds = array<i64: 1, 128>}, {transform_indices = @transform_7, window_bounds = array<i64: 8, 128>}]} {
    %c0 = arith.constant 0 : index
    %c0_0 = arith.constant 0 : index
    %0 = vector.load %arg1[%c0, %c0_0] : memref<8x128xf32, #tpu.memory_space<vmem>>, vector<8x128xf32>
    %1 = math.roundeven %0 : vector<8x128xf32>
    %cst = arith.constant 0.000000e+00 : f32
    %2 = vector.broadcast %cst : f32 to vector<8x128xf32>
    %3 = arith.cmpf oeq, %1, %2 : vector<8x128xf32>
    %4 = arith.extui %3 : vector<8x128xi1> to vector<8x128xi32>
    %5 = arith.sitofp %4 : vector<8x128xi32> to vector<8x128xf32>
    %6 = arith.truncf %0 : vector<8x128xf32> to vector<8x128xbf16>
    %c0_1 = arith.constant 0 : index
    %c0_2 = arith.constant 0 : index
    %7 = vector.load %arg2[%c0_1, %c0_2] : memref<128x128xbf16, #tpu.memory_space<vmem>>, vector<128x128xbf16>
    %cst_3 = arith.constant dense<0.000000e+00> : vector<8x128xf32>
    %8 = tpu.matmul %6, %7, %cst_3 {dimension_numbers = #tpu.dot_dimension_numbers<[1], [0], [0], [1], [0, 0, 1, 1], [], []>} : vector<8x128xbf16>, vector<128x128xbf16>, vector<8x128xf32> -> vector<8x128xf32>
    %c0_4 = arith.constant 0 : index
    %c0_5 = arith.constant 0 : index
    %9 = vector.load %arg3[%c0_4, %c0_5] : memref<1x128xf32, #tpu.memory_space<vmem>>, vector<1x128xf32>
    %10 = vector.broadcast %9 : vector<1x128xf32> to vector<8x128xf32>
    %11 = arith.addf %8, %10 : vector<8x128xf32>
    %cst_6 = arith.constant 0.000000e+00 : f32
    %12 = vector.broadcast %cst_6 : f32 to vector<8x128xf32>
    %13 = arith.maximumf %11, %12 : vector<8x128xf32>
    %14 = arith.truncf %13 : vector<8x128xf32> to vector<8x128xbf16>
    %c0_7 = arith.constant 0 : index
    %c0_8 = arith.constant 0 : index
    %c0_9 = arith.constant 0 : index
    %15 = vector.load %arg4[%c0_7, %c0_8, %c0_9] : memref<1x128x128xbf16, #tpu.memory_space<vmem>>, vector<1x128x128xbf16>
    %16 = vector.shape_cast %15 : vector<1x128x128xbf16> to vector<128x128xbf16>
    %cst_10 = arith.constant dense<0.000000e+00> : vector<8x128xf32>
    %17 = tpu.matmul %14, %16, %cst_10 {dimension_numbers = #tpu.dot_dimension_numbers<[1], [0], [0], [1], [0, 0, 1, 1], [], []>} : vector<8x128xbf16>, vector<128x128xbf16>, vector<8x128xf32> -> vector<8x128xf32>
    %c0_11 = arith.constant 0 : index
    %c0_12 = arith.constant 0 : index
    %c0_13 = arith.constant 0 : index
    %18 = vector.load %arg5[%c0_11, %c0_12, %c0_13] : memref<1x1x128xf32, #tpu.memory_space<vmem>>, vector<1x1x128xf32>
    %19 = vector.shape_cast %18 : vector<1x1x128xf32> to vector<1x128xf32>
    %20 = vector.broadcast %19 : vector<1x128xf32> to vector<8x128xf32>
    %21 = arith.addf %17, %20 : vector<8x128xf32>
    %cst_14 = arith.constant 0.000000e+00 : f32
    %22 = vector.broadcast %cst_14 : f32 to vector<8x128xf32>
    %23 = arith.maximumf %21, %22 : vector<8x128xf32>
    %24 = arith.truncf %23 : vector<8x128xf32> to vector<8x128xbf16>
    %c0_15 = arith.constant 0 : index
    %c0_16 = arith.constant 0 : index
    %25 = vector.load %arg6[%c0_15, %c0_16] : memref<128x128xbf16, #tpu.memory_space<vmem>>, vector<128x128xbf16>
    %cst_17 = arith.constant dense<0.000000e+00> : vector<8x128xf32>
    %26 = tpu.matmul %24, %25, %cst_17 {dimension_numbers = #tpu.dot_dimension_numbers<[1], [0], [0], [1], [0, 0, 1, 1], [], []>} : vector<8x128xbf16>, vector<128x128xbf16>, vector<8x128xf32> -> vector<8x128xf32>
    %c0_18 = arith.constant 0 : index
    %c0_19 = arith.constant 0 : index
    %27 = vector.load %arg7[%c0_18, %c0_19] : memref<1x128xf32, #tpu.memory_space<vmem>>, vector<1x128xf32>
    %28 = vector.broadcast %27 : vector<1x128xf32> to vector<8x128xf32>
    %29 = arith.addf %26, %28 : vector<8x128xf32>
    %cst_20 = arith.constant dense<0xFF800000> : vector<8xf32>
    %30 = vector.multi_reduction <maximumf>, %29, %cst_20 [1] : vector<8x128xf32> to vector<8xf32>
    %31 = vector.shape_cast %30 : vector<8xf32> to vector<8x1xf32>
    %32 = vector.broadcast %31 : vector<8x1xf32> to vector<8x128xf32>
    %33 = arith.subf %29, %32 : vector<8x128xf32>
    %34 = math.exp %33 : vector<8x128xf32>
    %35 = arith.mulf %34, %5 : vector<8x128xf32>
    %cst_21 = arith.constant dense<0.000000e+00> : vector<8xf32>
    %36 = vector.multi_reduction <add>, %35, %cst_21 [1] : vector<8x128xf32> to vector<8xf32>
    %37 = vector.shape_cast %36 : vector<8xf32> to vector<8x1xf32>
    %cst_22 = arith.constant dense<0.000000e+00> : vector<8xf32>
    %38 = vector.multi_reduction <add>, %34, %cst_22 [1] : vector<8x128xf32> to vector<8xf32>
    %39 = vector.shape_cast %38 : vector<8xf32> to vector<8x1xf32>
    %cst_23 = arith.constant 9.99999997E-7 : f32
    %40 = vector.broadcast %cst_23 : f32 to vector<8x1xf32>
    %41 = arith.mulf %40, %39 : vector<8x1xf32>
    %42 = arith.maximumf %37, %41 : vector<8x1xf32>
    %43 = vector.broadcast %42 : vector<8x1xf32> to vector<8x128xf32>
    %44 = arith.divf %35, %43 : vector<8x128xf32>
    %c0_24 = arith.constant 0 : index
    %c0_25 = arith.constant 0 : index
    %45 = vector.load %arg8[%c0_24, %c0_25] : memref<8x128xf32, #tpu.memory_space<vmem>>, vector<8x128xf32>
    tpu.vector_store %arg8[%c0_24, %c0_25], %44 {strides = array<i32>} : memref<8x128xf32, #tpu.memory_space<vmem>>, vector<8x128xf32>,
    return
  }
  func.func @transform_0(%arg0: i32) -> (i32, i32) {
    %c0_i32 = arith.constant 0 : i32
    %c0_i32_0 = arith.constant 0 : i32
    return %arg0, %c0_i32 : i32, i32
  }
  func.func @transform_1(%arg0: i32) -> (i32, i32) {
    %c0_i32 = arith.constant 0 : i32
    %c0_i32_0 = arith.constant 0 : i32
    %c0_i32_1 = arith.constant 0 : i32
    return %c0_i32, %c0_i32_0 : i32, i32
  }
  func.func @transform_2(%arg0: i32) -> (i32, i32) {
    %c0_i32 = arith.constant 0 : i32
    %c0_i32_0 = arith.constant 0 : i32
    %c0_i32_1 = arith.constant 0 : i32
    return %c0_i32, %c0_i32_0 : i32, i32
  }
  func.func @transform_3(%arg0: i32) -> (i32, i32, i32) {
    %c0_i32 = arith.constant 0 : i32
    %c0_i32_0 = arith.constant 0 : i32
    %c0_i32_1 = arith.constant 0 : i32
    %c0_i32_2 = arith.constant 0 : i32
    return %c0_i32, %c0_i32_0, %c0_i32_1 : i32, i32, i32
  }
  func.func @transform_4(%arg0: i32) -> (i32, i32, i32) {
    %c0_i32 = arith.constant 0 : i32
    %c0_i32_0 = arith.constant 0 : i32
    %c0_i32_1 = arith.constant 0 : i32
    %c0_i32_2 = arith.constant 0 : i32
    return %c0_i32, %c0_i32_0, %c0_i32_1 : i32, i32, i32
  }
  func.func @transform_5(%arg0: i32) -> (i32, i32) {
    %c0_i32 = arith.constant 0 : i32
    %c0_i32_0 = arith.constant 0 : i32
    %c0_i32_1 = arith.constant 0 : i32
    return %c0_i32, %c0_i32_0 : i32, i32
  }
  func.func @transform_6(%arg0: i32) -> (i32, i32) {
    %c0_i32 = arith.constant 0 : i32
    %c0_i32_0 = arith.constant 0 : i32
    %c0_i32_1 = arith.constant 0 : i32
    return %c0_i32, %c0_i32_0 : i32, i32
  }
  func.func @transform_7(%arg0: i32) -> (i32, i32) {
    %c0_i32 = arith.constant 0 : i32
    %c0_i32_0 = arith.constant 0 : i32
    return %arg0, %c0_i32 : i32, i32
  }
}

</mosaic_0001>

<llo_original>
// kernel: tpu_custom_call.1
$region0: #{tpu_custom_call.1}
  #allocation0 [shape = 'u32[]', space=smem, size = 0x4, offset = 0x4, fixed_abs, tag = 'smem constant byte address 0x4 - core index']
  #allocation1 [shape = 'u32[144,128]{1,0:T(1,128)}', space=vmem, size = 0x12000, scoped, tag = 'internal scratch']
  %s0 = inlined_call_operand.hbm [shape: f32[8,128], index: 0, kind: input, shape index: {}]
  %s1 = inlined_call_operand.hbm [shape: bf16[128,128], index: 1, kind: input, shape index: {}]
  %s2 = inlined_call_operand.vmem [shape: f32[1,128], index: 2, kind: input, shape index: {}]
  %s3 = inlined_call_operand.hbm [shape: bf16[1,128,128], index: 3, kind: input, shape index: {}]
  %s4 = inlined_call_operand.vmem [shape: f32[1,1,128], index: 4, kind: input, shape index: {}]
  %s5 = inlined_call_operand.hbm [shape: bf16[128,128], index: 5, kind: input, shape index: {}]
  %s6 = inlined_call_operand.vmem [shape: f32[1,128], index: 6, kind: input, shape index: {}]
  %s7 = inlined_call_operand.hbm [shape: f32[8,128], index: 7, kind: output, shape index: {}]
  %s8 = sld [smem:[#allocation0]]
  $region54: #{tpu_custom_call.1} parent=0
    _
  %s10 = ssub.s32 1, %s8
  %s11 = scalar_select 0, %s10, %s8
  $region1: #{tpu_custom_call.1} parent=0
    #allocation2 [shape = 'u8[4096]{0}', space=vmem, size = 0x1000, scoped, tag = 'input window, operand 0, single buffered']
    #allocation3 [shape = 's32[1]{0}', space=sflag, size = 0x4, scoped, tag = 'scoped memory for tpu_custom_call.1']
    #allocation4 [shape = 's32[1]{0}', space=sflag, size = 0x4, scoped, tag = 'scoped memory for tpu_custom_call.1']
    #allocation5 [shape = 'u8[32768]{0}', space=vmem, size = 0x8000, scoped, tag = 'input window, operand 1, single buffered']
    #allocation6 [shape = 's32[1]{0}', space=sflag, size = 0x4, scoped, tag = 'scoped memory for tpu_custom_call.1']
    #allocation7 [shape = 'u8[32768]{0}', space=vmem, size = 0x8000, scoped, tag = 'input window, operand 3, single buffered']
    #allocation8 [shape = 'u8[32768]{0}', space=vmem, size = 0x8000, scoped, tag = 'input window, operand 5, single buffered']
    #allocation9 [shape = 's32[1]{0}', space=sflag, size = 0x4, scoped, tag = 'scoped memory for tpu_custom_call.1']
    #allocation10 [shape = 'u8[4096]{0}', space=vmem, size = 0x1000, scoped, tag = 'output window, operand 0, single buffered']
    %12 = vsyncpa [#allocation3], 0
    %13 = vsyncpa [#allocation6], 0
    %14 = vsyncpa [#allocation9], 0
    %15 = vsyncpa [#allocation4], 0
    // Predicated region
    $region2: #{tpu_custom_call.1} parent=1 // pred_check
      _
    $region3: #{tpu_custom_call.1} parent=1 // pred_check_branch
      %17 = sbr.rel (0) target = $region5
    $region4: #{tpu_custom_call.1} parent=1 // pred_region
      %s19 = ssub.s32 128, 128
      %20 = vsyncadd [#allocation3], %s19
      %s22 = sshll.u32 [#allocation2], 4
      %s23 = int_to_ptr.vmem [resolvable:$true] %s22
      %25 = dma.hbm_to_vmem [thread:$0]  %s0, 128, %s23, [#allocation3]
    $region5: #{tpu_custom_call.1} parent=1 // pred_fallthru
      _
    // Predicated region
    $region6: #{tpu_custom_call.1} parent=1 // pred_check
      _
    $region7: #{tpu_custom_call.1} parent=1 // pred_check_branch
      %27 = sbr.rel (0) target = $region9
    $region8: #{tpu_custom_call.1} parent=1 // pred_region
      %s29 = ssub.s32 1024, 1024
      %30 = vsyncadd [#allocation6], %s29
      %s31 = sshll.u32 [#allocation5], 4
      %s32 = int_to_ptr.vmem [resolvable:$true] %s31
      %37 = dma.hbm_to_vmem [thread:$0]  %s1, 1024, %s32, [#allocation6], 64, 64, 4
    $region9: #{tpu_custom_call.1} parent=1 // pred_fallthru
      _
    // Predicated region
    $region10: #{tpu_custom_call.1} parent=1 // pred_check
      _
    $region11: #{tpu_custom_call.1} parent=1 // pred_check_branch
      %39 = sbr.rel (0) target = $region13
    $region12: #{tpu_custom_call.1} parent=1 // pred_region
      _
    $region13: #{tpu_custom_call.1} parent=1 // pred_fallthru
      _
    // Predicated region
    $region14: #{tpu_custom_call.1} parent=1 // pred_check
      _
    $region15: #{tpu_custom_call.1} parent=1 // pred_check_branch
      %41 = sbr.rel (0) target = $region17
    $region16: #{tpu_custom_call.1} parent=1 // pred_region
      %s43 = ssub.s32 1024, 1024
      %44 = vsyncadd [#allocation6], %s43
      %s45 = sshll.u32 [#allocation7], 4
      %s46 = int_to_ptr.vmem [resolvable:$true] %s45
      %51 = dma.hbm_to_vmem [thread:$0]  %s3, 1024, %s46, [#allocation6], 64, 64, 4
    $region17: #{tpu_custom_call.1} parent=1 // pred_fallthru
      _
    // Predicated region
    $region18: #{tpu_custom_call.1} parent=1 // pred_check
      _
    $region19: #{tpu_custom_call.1} parent=1 // pred_check_branch
      %53 = sbr.rel (0) target = $region21
    $region20: #{tpu_custom_call.1} parent=1 // pred_region
      _
    $region21: #{tpu_custom_call.1} parent=1 // pred_fallthru
      _
    // Predicated region
    $region22: #{tpu_custom_call.1} parent=1 // pred_check
      _
    $region23: #{tpu_custom_call.1} parent=1 // pred_check_branch
      %55 = sbr.rel (0) target = $region25
    $region24: #{tpu_custom_call.1} parent=1 // pred_region
      %s57 = ssub.s32 1024, 1024
      %58 = vsyncadd [#allocation9], %s57
      %s59 = sshll.u32 [#allocation8], 4
      %s60 = int_to_ptr.vmem [resolvable:$true] %s59
      %65 = dma.hbm_to_vmem [thread:$0]  %s5, 1024, %s60, [#allocation9], 64, 64, 4
    $region25: #{tpu_custom_call.1} parent=1 // pred_fallthru
      _
    // Predicated region
    $region26: #{tpu_custom_call.1} parent=1 // pred_check
      _
    $region27: #{tpu_custom_call.1} parent=1 // pred_check_branch
      %67 = sbr.rel (0) target = $region29
    $region28: #{tpu_custom_call.1} parent=1 // pred_region
      _
    $region29: #{tpu_custom_call.1} parent=1 // pred_fallthru
      _
    // Predicated region
    $region30: #{tpu_custom_call.1} parent=1 // pred_check
      _
    $region31: #{tpu_custom_call.1} parent=1 // pred_check_branch
      %69 = sbr.rel (0) target = $region33
    $region32: #{tpu_custom_call.1} parent=1 // pred_region
      %70 = dma.done [#allocation3], 128
    $region33: #{tpu_custom_call.1} parent=1 // pred_fallthru
      _
    // Predicated region
    $region34: #{tpu_custom_call.1} parent=1 // pred_check
      _
    $region35: #{tpu_custom_call.1} parent=1 // pred_check_branch
      %72 = sbr.rel (0) target = $region37
    $region36: #{tpu_custom_call.1} parent=1 // pred_region
      %73 = dma.done [#allocation6], 1024
    $region37: #{tpu_custom_call.1} parent=1 // pred_fallthru
      _
    // Predicated region
    $region38: #{tpu_custom_call.1} parent=1 // pred_check
      _
    $region39: #{tpu_custom_call.1} parent=1 // pred_check_branch
      %75 = sbr.rel (0) target = $region41
    $region40: #{tpu_custom_call.1} parent=1 // pred_region
      %76 = dma.done [#allocation6], 1024
    $region41: #{tpu_custom_call.1} parent=1 // pred_fallthru
      _
    // Predicated region
    $region42: #{tpu_custom_call.1} parent=1 // pred_check
      _
    $region43: #{tpu_custom_call.1} parent=1 // pred_check_branch
      %78 = sbr.rel (0) target = $region45
    $region44: #{tpu_custom_call.1} parent=1 // pred_region
      %79 = dma.done [#allocation9], 1024
    $region45: #{tpu_custom_call.1} parent=1 // pred_fallthru
      _
    %v81 = vld [vmem:[#allocation2] sm:$0xff]
    %v82 = vround.ne.pseudo %v81
    %vm83 = vcmp.eq.f32.partialorder %v82, 0.0
    %v84 = vsel %vm83, 1, 0
    %v85 = vcvt.s32.f32 %v84
    %v86 = vpack.c.bf16 %v81, %v81
    %v87 = vld [vmem:[#allocation5] sm:$0xf]
    %v88 = vld [vmem:[#allocation5 + $0x4] sm:$0xf]
    %v89 = vld [vmem:[#allocation5 + $0x8] sm:$0xf]
    %v90 = vld [vmem:[#allocation5 + $0xc] sm:$0xf]
    %v91 = vld [vmem:[#allocation5 + $0x10] sm:$0xf]
    %v92 = vld [vmem:[#allocation5 + $0x14] sm:$0xf]
    %v93 = vld [vmem:[#allocation5 + $0x18] sm:$0xf]
    %v94 = vld [vmem:[#allocation5 + $0x1c] sm:$0xf]
    %v95 = vld [vmem:[#allocation5 + $0x20] sm:$0xf]
    %v96 = vld [vmem:[#allocation5 + $0x24] sm:$0xf]
    %v97 = vld [vmem:[#allocation5 + $0x28] sm:$0xf]
    %v98 = vld [vmem:[#allocation5 + $0x2c] sm:$0xf]
    %v99 = vld [vmem:[#allocation5 + $0x30] sm:$0xf]
    %v100 = vld [vmem:[#allocation5 + $0x34] sm:$0xf]
    %v101 = vld [vmem:[#allocation5 + $0x38] sm:$0xf]
    %v102 = vld [vmem:[#allocation5 + $0x3c] sm:$0xf]
    %v103 = vld [vmem:[%s2] sm:$0x1]
    %v105 = vlaneseq
    %v106 = vshrl.u32 %v105, 7
    %v107 = vsub.s32 0, %v106
    %v108 = vrot.slane %v103, %v107
    %v126 = vunpack.c.l.b16 %v87
    %v127 = vunpack.c.l.b16 %v88
    %v128 = vunpack.c.l.b16 %v89
    %v129 = vunpack.c.l.b16 %v90
    %v130 = vunpack.c.l.b16 %v91
    %v131 = vunpack.c.l.b16 %v92
    %v132 = vunpack.c.l.b16 %v93
    %v133 = vunpack.c.l.b16 %v94
    %v134 = vunpack.c.l.b16 %v95
    %v135 = vunpack.c.l.b16 %v96
    %v136 = vunpack.c.l.b16 %v97
    %v137 = vunpack.c.l.b16 %v98
    %v138 = vunpack.c.l.b16 %v99
    %v139 = vunpack.c.l.b16 %v100
    %v140 = vunpack.c.l.b16 %v101
    %v141 = vunpack.c.l.b16 %v102
    %v142 = vpack.c.b16 %v127, %v126
    %v143 = vpack.c.b16 %v129, %v128
    %v144 = vpack.c.b16 %v131, %v130
    %v145 = vpack.c.b16 %v133, %v132
    %v146 = vpack.c.b16 %v135, %v134
    %v147 = vpack.c.b16 %v137, %v136
    %v148 = vpack.c.b16 %v139, %v138
    %v149 = vpack.c.b16 %v141, %v140
    %158 = vmatprep.subr.bf16.mxu0 0
    %159 = vmatpush1.bf16.msra.mxu0 %v149
    %160 = vmatprep.subr.bf16.mxu0 0
    %161 = vmatpush1.bf16.msra.mxu0 %v148
    %162 = vmatprep.subr.bf16.mxu0 0
    %163 = vmatpush1.bf16.msra.mxu0 %v147
    %164 = vmatprep.subr.bf16.mxu0 0
    %165 = vmatpush1.bf16.msra.mxu0 %v146
    %166 = vmatprep.subr.bf16.mxu0 0
    %167 = vmatpush1.bf16.msra.mxu0 %v145
    %168 = vmatprep.subr.bf16.mxu0 0
    %169 = vmatpush1.bf16.msra.mxu0 %v144
    %170 = vmatprep.subr.bf16.mxu0 0
    %171 = vmatpush1.bf16.msra.mxu0 %v143
    %172 = vmatprep.subr.bf16.mxu0 0
    %173 = vmatpush1.bf16.msra.mxu0 %v142
    %174 = vmatprep.subr.bf16.mxu0 0
    %175 = vmatpush2.bf16.msra.mxu0 0
    %176 = vmatprep.subr.bf16.mxu0 0
    %177 = vmatpush2.bf16.msra.mxu0 0
    %178 = vmatprep.subr.bf16.mxu0 0
    %179 = vmatpush2.bf16.msra.mxu0 0
    %180 = vmatprep.subr.bf16.mxu0 0
    %181 = vmatpush2.bf16.msra.mxu0 0
    %182 = vmatprep.subr.bf16.mxu0 0
    %183 = vmatpush2.bf16.msra.mxu0 0
    %184 = vmatprep.subr.bf16.mxu0 0
    %185 = vmatpush2.bf16.msra.mxu0 0
    %186 = vmatprep.subr.bf16.mxu0 0
    %187 = vmatpush2.bf16.msra.mxu0 0
    %188 = vmatprep.subr.bf16.mxu0 0
    %189 = vmatpush2.bf16.msra.mxu0 0
    %190 = vmatprep.mubr.bf16.mxu0 0
    %191 = vmatmul.mubr.bf16.gmra.mxu0 %v86
    %v192 = vpop.f32.mrf.mxu0
    %v193 = vadd.f32 %v108, %v192
    %v194 = vpop.f32.mrf.mxu0
    %v195 = vpop.f32.mrf.mxu0
    %v196 = vpop.f32.mrf.mxu0
    %197 = vdwg.mxu0
    %v198 = vmax.f32 %v193, 0.0
    %v199 = vpack.c.bf16 %v198, %v198
    %v200 = vld [vmem:[#allocation7] sm:$0xf]
    %v201 = vld [vmem:[#allocation7 + $0x4] sm:$0xf]
    %v202 = vld [vmem:[#allocation7 + $0x8] sm:$0xf]
    %v203 = vld [vmem:[#allocation7 + $0xc] sm:$0xf]
    %v204 = vld [vmem:[#allocation7 + $0x10] sm:$0xf]
    %v205 = vld [vmem:[#allocation7 + $0x14] sm:$0xf]
    %v206 = vld [vmem:[#allocation7 + $0x18] sm:$0xf]
    %v207 = vld [vmem:[#allocation7 + $0x1c] sm:$0xf]
    %v208 = vld [vmem:[#allocation7 + $0x20] sm:$0xf]
    %v209 = vld [vmem:[#allocation7 + $0x24] sm:$0xf]
    %v210 = vld [vmem:[#allocation7 + $0x28] sm:$0xf]
    %v211 = vld [vmem:[#allocation7 + $0x2c] sm:$0xf]
    %v212 = vld [vmem:[#allocation7 + $0x30] sm:$0xf]
    %v213 = vld [vmem:[#allocation7 + $0x34] sm:$0xf]
    %v214 = vld [vmem:[#allocation7 + $0x38] sm:$0xf]
    %v215 = vld [vmem:[#allocation7 + $0x3c] sm:$0xf]
    %v216 = vld [vmem:[%s4] sm:$0x1]
    %v218 = vlaneseq
    %v219 = vshrl.u32 %v218, 7
    %v220 = vsub.s32 0, %v219
    %v221 = vrot.slane %v216, %v220
    %v239 = vunpack.c.l.b16 %v200
    %v240 = vunpack.c.l.b16 %v201
    %v241 = vunpack.c.l.b16 %v202
    %v242 = vunpack.c.l.b16 %v203
    %v243 = vunpack.c.l.b16 %v204
    %v244 = vunpack.c.l.b16 %v205
    %v245 = vunpack.c.l.b16 %v206
    %v246 = vunpack.c.l.b16 %v207
    %v247 = vunpack.c.l.b16 %v208
    %v248 = vunpack.c.l.b16 %v209
    %v249 = vunpack.c.l.b16 %v210
    %v250 = vunpack.c.l.b16 %v211
    %v251 = vunpack.c.l.b16 %v212
    %v252 = vunpack.c.l.b16 %v213
    %v253 = vunpack.c.l.b16 %v214
    %v254 = vunpack.c.l.b16 %v215
    %v255 = vpack.c.b16 %v240, %v239
    %v256 = vpack.c.b16 %v242, %v241
    %v257 = vpack.c.b16 %v244, %v243
    %v258 = vpack.c.b16 %v246, %v245
    %v259 = vpack.c.b16 %v248, %v247
    %v260 = vpack.c.b16 %v250, %v249
    %v261 = vpack.c.b16 %v252, %v251
    %v262 = vpack.c.b16 %v254, %v253
    %271 = vmatprep.subr.bf16.mxu0 0
    %272 = vmatpush1.bf16.msra.mxu0 %v262
    %273 = vmatprep.subr.bf16.mxu0 0
    %274 = vmatpush1.bf16.msra.mxu0 %v261
    %275 = vmatprep.subr.bf16.mxu0 0
    %276 = vmatpush1.bf16.msra.mxu0 %v260
    %277 = vmatprep.subr.bf16.mxu0 0
    %278 = vmatpush1.bf16.msra.mxu0 %v259
    %279 = vmatprep.subr.bf16.mxu0 0
    %280 = vmatpush1.bf16.msra.mxu0 %v258
    %281 = vmatprep.subr.bf16.mxu0 0
    %282 = vmatpush1.bf16.msra.mxu0 %v257
    %283 = vmatprep.subr.bf16.mxu0 0
    %284 = vmatpush1.bf16.msra.mxu0 %v256
    %285 = vmatprep.subr.bf16.mxu0 0
    %286 = vmatpush1.bf16.msra.mxu0 %v255
    %287 = vmatprep.subr.bf16.mxu0 0
    %288 = vmatpush2.bf16.msra.mxu0 0
    %289 = vmatprep.subr.bf16.mxu0 0
    %290 = vmatpush2.bf16.msra.mxu0 0
    %291 = vmatprep.subr.bf16.mxu0 0
    %292 = vmatpush2.bf16.msra.mxu0 0
    %293 = vmatprep.subr.bf16.mxu0 0
    %294 = vmatpush2.bf16.msra.mxu0 0
    %295 = vmatprep.subr.bf16.mxu0 0
    %296 = vmatpush2.bf16.msra.mxu0 0
    %297 = vmatprep.subr.bf16.mxu0 0
    %298 = vmatpush2.bf16.msra.mxu0 0
    %299 = vmatprep.subr.bf16.mxu0 0
    %300 = vmatpush2.bf16.msra.mxu0 0
    %301 = vmatprep.subr.bf16.mxu0 0
    %302 = vmatpush2.bf16.msra.mxu0 0
    %303 = vmatprep.mubr.bf16.mxu0 0
    %304 = vmatmul.mubr.bf16.gmra.mxu0 %v199
    %v305 = vpop.f32.mrf.mxu0
    %v306 = vadd.f32 %v221, %v305
    %v307 = vpop.f32.mrf.mxu0
    %v308 = vpop.f32.mrf.mxu0
    %v309 = vpop.f32.mrf.mxu0
    %310 = vdwg.mxu0
    %v311 = vmax.f32 %v306, 0.0
    %v312 = vpack.c.bf16 %v311, %v311
    %v313 = vld [vmem:[#allocation8] sm:$0xf]
    %v314 = vld [vmem:[#allocation8 + $0x4] sm:$0xf]
    %v315 = vld [vmem:[#allocation8 + $0x8] sm:$0xf]
    %v316 = vld [vmem:[#allocation8 + $0xc] sm:$0xf]
    %v317 = vld [vmem:[#allocation8 + $0x10] sm:$0xf]
    %v318 = vld [vmem:[#allocation8 + $0x14] sm:$0xf]
    %v319 = vld [vmem:[#allocation8 + $0x18] sm:$0xf]
    %v320 = vld [vmem:[#allocation8 + $0x1c] sm:$0xf]
    %v321 = vld [vmem:[#allocation8 + $0x20] sm:$0xf]
    %v322 = vld [vmem:[#allocation8 + $0x24] sm:$0xf]
    %v323 = vld [vmem:[#allocation8 + $0x28] sm:$0xf]
    %v324 = vld [vmem:[#allocation8 + $0x2c] sm:$0xf]
    %v325 = vld [vmem:[#allocation8 + $0x30] sm:$0xf]
    %v326 = vld [vmem:[#allocation8 + $0x34] sm:$0xf]
    %v327 = vld [vmem:[#allocation8 + $0x38] sm:$0xf]
    %v328 = vld [vmem:[#allocation8 + $0x3c] sm:$0xf]
    %v329 = vld [vmem:[%s6] sm:$0x1]
    %v331 = vlaneseq
    %v332 = vshrl.u32 %v331, 7
    %v333 = vsub.s32 0, %v332
    %v334 = vrot.slane %v329, %v333
    %v352 = vunpack.c.l.b16 %v313
    %v353 = vunpack.c.l.b16 %v314
    %v354 = vunpack.c.l.b16 %v315
    %v355 = vunpack.c.l.b16 %v316
    %v356 = vunpack.c.l.b16 %v317
    %v357 = vunpack.c.l.b16 %v318
    %v358 = vunpack.c.l.b16 %v319
    %v359 = vunpack.c.l.b16 %v320
    %v360 = vunpack.c.l.b16 %v321
    %v361 = vunpack.c.l.b16 %v322
    %v362 = vunpack.c.l.b16 %v323
    %v363 = vunpack.c.l.b16 %v324
    %v364 = vunpack.c.l.b16 %v325
    %v365 = vunpack.c.l.b16 %v326
    %v366 = vunpack.c.l.b16 %v327
    %v367 = vunpack.c.l.b16 %v328
    %v368 = vpack.c.b16 %v353, %v352
    %v369 = vpack.c.b16 %v355, %v354
    %v370 = vpack.c.b16 %v357, %v356
    %v371 = vpack.c.b16 %v359, %v358
    %v372 = vpack.c.b16 %v361, %v360
    %v373 = vpack.c.b16 %v363, %v362
    %v374 = vpack.c.b16 %v365, %v364
    %v375 = vpack.c.b16 %v367, %v366
    %384 = vmatprep.subr.bf16.mxu0 0
    %385 = vmatpush1.bf16.msra.mxu0 %v375
    %386 = vmatprep.subr.bf16.mxu0 0
    %387 = vmatpush1.bf16.msra.mxu0 %v374
    %388 = vmatprep.subr.bf16.mxu0 0
    %389 = vmatpush1.bf16.msra.mxu0 %v373
    %390 = vmatprep.subr.bf16.mxu0 0
    %391 = vmatpush1.bf16.msra.mxu0 %v372
    %392 = vmatprep.subr.bf16.mxu0 0
    %393 = vmatpush1.bf16.msra.mxu0 %v371
    %394 = vmatprep.subr.bf16.mxu0 0
    %395 = vmatpush1.bf16.msra.mxu0 %v370
    %396 = vmatprep.subr.bf16.mxu0 0
    %397 = vmatpush1.bf16.msra.mxu0 %v369
    %398 = vmatprep.subr.bf16.mxu0 0
    %399 = vmatpush1.bf16.msra.mxu0 %v368
    %400 = vmatprep.subr.bf16.mxu0 0
    %401 = vmatpush2.bf16.msra.mxu0 0
    %402 = vmatprep.subr.bf16.mxu0 0
    %403 = vmatpush2.bf16.msra.mxu0 0
    %404 = vmatprep.subr.bf16.mxu0 0
    %405 = vmatpush2.bf16.msra.mxu0 0
    %406 = vmatprep.subr.bf16.mxu0 0
    %407 = vmatpush2.bf16.msra.mxu0 0
    %408 = vmatprep.subr.bf16.mxu0 0
    %409 = vmatpush2.bf16.msra.mxu0 0
    %410 = vmatprep.subr.bf16.mxu0 0
    %411 = vmatpush2.bf16.msra.mxu0 0
    %412 = vmatprep.subr.bf16.mxu0 0
    %413 = vmatpush2.bf16.msra.mxu0 0
    %414 = vmatprep.subr.bf16.mxu0 0
    %415 = vmatpush2.bf16.msra.mxu0 0
    %416 = vmatprep.mubr.bf16.mxu0 0
    %417 = vmatmul.mubr.bf16.gmra.mxu0 %v312
    %v418 = vpop.f32.mrf.mxu0
    %v419 = vadd.f32 %v334, %v418
    %v420 = vpop.f32.mrf.mxu0
    %v421 = vpop.f32.mrf.mxu0
    %v422 = vpop.f32.mrf.mxu0
    %423 = vdwg.mxu0
    %424 = vmax.xlane.f32.xlu0 %v419
    %v425 = vpop.xlane.xlu0 %424
    %v426 = vsub.f32 %v419, %v425
    %v427 = vmul.f32 %v426, 1.442695
    %v428 = vpow.pop %v427
    %v429 = vmul.f32 %v428, %v85
    %430 = vadd.xlane.f32.xlu0 %v429
    %v431 = vpop.xlane.xlu0 %430
    %432 = vadd.xlane.f32.xlu0 %v428
    %v433 = vpop.xlane.xlu0 %432
    %v434 = vmul.f32 %v433, 1e-06
    %v435 = vmax.f32 %v431, %v434
    %v436 = vrcp.pop %v435
    %v437 = vmul.f32 %v429, %v436
    %438 = vst [vmem:[#allocation10] sm:$0xff] %v437
    // Predicated region
    $region46: #{tpu_custom_call.1} parent=1 // pred_check
      _
    $region47: #{tpu_custom_call.1} parent=1 // pred_check_branch
      %440 = sbr.rel (0) target = $region49
    $region48: #{tpu_custom_call.1} parent=1 // pred_region
      %s442 = ssub.s32 128, 128
      %443 = vsyncadd [#allocation4], %s442
      %s445 = sshll.u32 [#allocation10], 4
      %s446 = int_to_ptr.vmem [resolvable:$true] %s445
      %448 = dma.vmem_to_hbm [thread:$0]  %s446, 128, %s7, [#allocation4]
    $region49: #{tpu_custom_call.1} parent=1 // pred_fallthru
      _
    // Predicated region
    $region50: #{tpu_custom_call.1} parent=1 // pred_check
      _
    $region51: #{tpu_custom_call.1} parent=1 // pred_check_branch
      %450 = sbr.rel (0) target = $region53
    $region52: #{tpu_custom_call.1} parent=1 // pred_region
      %451 = dma.done [#allocation4], 128
    $region53: #{tpu_custom_call.1} parent=1 // pred_fallthru
      _
    %452 = vsyncpa [#allocation3], 1
    %453 = vsyncpa [#allocation6], 1
    %454 = vsyncpa [#allocation9], 1
    %455 = vsyncpa [#allocation4], 1

</llo_original>
